<compile_context>
chip_gen: v7x
topology: tpu7x:2x2x1
jax: 0.10.0
libtpu: 0.0.40
codegen_flags: <defaults>
</compile_context>

<pallas_src>
import functools

import jax
import jax.numpy as jnp
from jax.experimental import pallas as pl
from jax.experimental.pallas import tpu as pltpu


def autoencoder_kernel(x_ref,
                       w1_ref, b1_ref, w2_ref, b2_ref,
                       w3_ref, b3_ref, w4_ref, b4_ref,
                       enc_ref, dec_ref, *, approx_sigmoid):
    """Fused forward pass: 4 MXU matmuls + f32 bias/ReLU/sigmoid on VPU/EUP."""
    mm_dtype = w1_ref.dtype  # bf16 (default) or f32; accumulation is always f32

    def mm(a, w_ref):
        return jnp.dot(a.astype(mm_dtype), w_ref[...],
                       preferred_element_type=jnp.float32)

    # x arrives in its native dtype; the MXU cast happens here, on-chip, so no
    # separate wrapper-side cast pass through HBM is needed.
    x = x_ref[...]

    # encoder -- bias add / ReLU in f32; downcast to mm_dtype right after the
    # ReLU so the value held across the next matmul is half-width (no-op on
    # the f32-exact path).
    h1 = jnp.maximum(mm(x, w1_ref) + b1_ref[...], 0.0).astype(mm_dtype)
    enc_f32 = jnp.maximum(mm(h1, w2_ref) + b2_ref[...], 0.0)
    enc = enc_f32.astype(mm_dtype)

    # decoder
    h2 = jnp.maximum(mm(enc, w3_ref) + b3_ref[...], 0.0).astype(mm_dtype)
    z = mm(h2, w4_ref) + b4_ref[...]
    if approx_sigmoid:
        # exp + approximate reciprocal both land on the EUP slot -> VALU free.
        dec = pl.reciprocal(1.0 + jnp.exp(-z), approx=True)
    else:
        dec = jax.nn.sigmoid(z)

    enc_ref[...] = enc_f32.astype(enc_ref.dtype)
    dec_ref[...] = dec.astype(dec_ref.dtype)


def _choose_tile(batch, tb):
    """Pick (rows_per_tile, num_grid_steps).

    Tiny batches -> a single step (overhead-bound regime; tb_eff == batch also
    satisfies the BlockSpec full-dim rule without an 8-multiple). Moderate /
    large batches -> at least 2 steps (keeps both v7x TensorCores busy), each
    at most `tb` rows; the ragged last block is masked by Pallas.
    """
    if batch < 256 and batch <= tb:
        return batch, 1
    tb = max(8, (tb // 8) * 8)                       # sublane-aligned cap
    half = ((batch + 1) // 2 + 7) // 8 * 8           # ceil(batch/2), 8-aligned
    tb_eff = min(tb, half)
    steps = pl.cdiv(batch, tb_eff)
    return tb_eff, steps


def autoencoder_forward(x, params, *, tb=2048, matmul_dtype=jnp.bfloat16,
                        out_dtype=None):
    """Run the fused autoencoder forward pass.

    tb:           max batch-tile rows (sweepable; default 2048 fits default
                  scoped VMEM on v5e/v6e/v7x -- no vmem_limit_bytes needed).
    matmul_dtype: dtype of the MXU operands (bf16 default; f32 for exact math).
    out_dtype:    dtype of the returned arrays (default: x.dtype). Pass
                  jnp.bfloat16 to halve the dominant writeback stream.
    """
    batch, input_dim = x.shape
    out_dtype = x.dtype if out_dtype is None else out_dtype
    (w1, b1), (w2, b2), (w3, b3), (w4, b4) = params
    encoded_dim = w2.shape[1]

    # Only the (tiny, one-time) weights are pre-cast; x stays in its native
    # dtype and is cast on-chip. Biases stay f32 (added in f32 on the VPU).
    cast = lambda a: a.astype(matmul_dtype)
    w1c, w2c, w3c, w4c = cast(w1), cast(w2), cast(w3), cast(w4)
    b1f, b2f, b3f, b4f = (b.astype(jnp.float32) for b in (b1, b2, b3, b4))

    tb_eff, steps = _choose_tile(batch, tb)

    rep = lambda i: (0, 0)  # constant block index: weights stay VMEM-resident

    kernel = functools.partial(
        autoencoder_kernel,
        approx_sigmoid=(jnp.dtype(matmul_dtype) != jnp.dtype(jnp.float32)))

    # TODO(synk): if a profile shows exposed x-tile DMA at small tb, add
    # pipeline_mode=pl.Buffered(3) to the x BlockSpec (x is the only pipelined
    # input stream; a third buffer costs almost nothing at these widths).
    enc, dec = pl.pallas_call(
        kernel,
        out_shape=(jax.ShapeDtypeStruct((batch, encoded_dim), out_dtype),
                   jax.ShapeDtypeStruct((batch, input_dim), out_dtype)),
        grid_spec=pltpu.PrefetchScalarGridSpec(
            num_scalar_prefetch=0,
            grid=(steps,),
            in_specs=[
                pl.BlockSpec((tb_eff, input_dim), lambda i: (i, 0)),   # x tile
                pl.BlockSpec(w1c.shape, rep), pl.BlockSpec(b1f.shape, rep),
                pl.BlockSpec(w2c.shape, rep), pl.BlockSpec(b2f.shape, rep),
                pl.BlockSpec(w3c.shape, rep), pl.BlockSpec(b3f.shape, rep),
                pl.BlockSpec(w4c.shape, rep), pl.BlockSpec(b4f.shape, rep),
            ],
            out_specs=(pl.BlockSpec((tb_eff, encoded_dim), lambda i: (i, 0)),
                       pl.BlockSpec((tb_eff, input_dim), lambda i: (i, 0))),
        ),
        compiler_params=pltpu.CompilerParams(
            dimension_semantics=("parallel",)),
    )(x, w1c, b1f, w2c, b2f, w3c, b3f, w4c, b4f)
    return enc, dec


def init_params(key, input_dim, encoded_dim, hidden=64, dtype=jnp.float32):
    """Deterministic synthetic parameters (nn.Linear shapes, stored as (in, out))."""
    keys = jax.random.split(key, 8)

    def linear(kw, kb, fan_in, fan_out):
        # mimic PyTorch's default U(-1/sqrt(fan_in), 1/sqrt(fan_in)) init
        bound = 1.0 / jnp.sqrt(jnp.asarray(fan_in, dtype))
        w = jax.random.uniform(kw, (fan_in, fan_out), dtype, -bound, bound)
        b = jax.random.uniform(kb, (1, fan_out), dtype, -bound, bound)
        return w, b

    return (
        linear(keys[0], keys[1], input_dim, hidden),     # encoder Linear 1
        linear(keys[2], keys[3], hidden, encoded_dim),   # encoder Linear 2
        linear(keys[4], keys[5], encoded_dim, hidden),   # decoder Linear 1
        linear(keys[6], keys[7], hidden, input_dim),     # decoder Linear 2
    )


def reference_forward(x, params):
    (w1, b1), (w2, b2), (w3, b3), (w4, b4) = params
    h1 = jnp.maximum(x @ w1 + b1, 0.0)
    enc = jnp.maximum(h1 @ w2 + b2, 0.0)
    h2 = jnp.maximum(enc @ w3 + b3, 0.0)
    dec = jax.nn.sigmoid(h2 @ w4 + b4)
    return enc, dec


if __name__ == "__main__":
    input_dim = 32
    encoded_dim = 16
    batch = 16

    key = jax.random.PRNGKey(0)
    kx, kp, kx2 = jax.random.split(key, 3)
    x = jax.random.uniform(kx, (batch, input_dim), jnp.float32)
    params = init_params(kp, input_dim, encoded_dim)
    enc_ref, dec_ref = reference_forward(x, params)

    # 1) Exact-math path (f32 MXU operands), single grid step (small batch).
    enc32, dec32 = autoencoder_forward(x, params, matmul_dtype=jnp.float32)
    jax.block_until_ready((enc32, dec32))
    assert enc32.shape == (batch, encoded_dim) and dec32.shape == (batch, input_dim)
    assert jnp.allclose(enc32, enc_ref, atol=1e-5, rtol=1e-5)
    assert jnp.allclose(dec32, dec_ref, atol=1e-5, rtol=1e-5)

    # 2) Default fast path: bf16 MXU operands, f32 accumulation/activations,
    #    EUP-approx sigmoid reciprocal.
    enc_bf, dec_bf = autoencoder_forward(x, params)
    jax.block_until_ready((enc_bf, dec_bf))
    assert jnp.allclose(enc_bf, enc_ref, atol=5e-2, rtol=5e-2)
    assert jnp.allclose(dec_bf, dec_ref, atol=5e-2, rtol=5e-2)

    # 3) Multi-step path with a ragged last block: batch=272, tb=128 ->
    #    3 tiles of 128/128/16 rows, no jnp.pad, no output slicing.
    batch2, tb2 = 272, 128
    x2 = jax.random.uniform(kx2, (batch2, input_dim), jnp.float32)
    enc2, dec2 = autoencoder_forward(x2, params, tb=tb2, matmul_dtype=jnp.float32)
    jax.block_until_ready((enc2, dec2))
    enc2_ref, dec2_ref = reference_forward(x2, params)
    assert enc2.shape == (batch2, encoded_dim) and dec2.shape == (batch2, input_dim)
    assert jnp.allclose(enc2, enc2_ref, atol=1e-5, rtol=1e-5)
    assert jnp.allclose(dec2, dec2_ref, atol=1e-5, rtol=1e-5)

    # 4) bf16 outputs written directly from the kernel (halves writeback bytes).
    enc_b16, dec_b16 = autoencoder_forward(x2, params, tb=tb2,
                                           out_dtype=jnp.bfloat16)
    jax.block_until_ready((enc_b16, dec_b16))
    assert enc_b16.dtype == jnp.bfloat16 and dec_b16.dtype == jnp.bfloat16
    assert jnp.allclose(enc_b16.astype(jnp.float32), enc2_ref, atol=5e-2, rtol=5e-2)
    assert jnp.allclose(dec_b16.astype(jnp.float32), dec2_ref, atol=5e-2, rtol=5e-2)

    print("KERNEL_OK")
</pallas_src>

<mosaic_0001>
module attributes {stable_mosaic.version = 11 : i64} {
  func.func @autoencoder_kernel(%arg0: i32, %arg1: memref<16x32xf32, #tpu.memory_space<vmem>>, %arg2: memref<32x64xf32, #tpu.memory_space<vmem>>, %arg3: memref<1x64xf32, #tpu.memory_space<vmem>>, %arg4: memref<64x16xf32, #tpu.memory_space<vmem>>, %arg5: memref<1x16xf32, #tpu.memory_space<vmem>>, %arg6: memref<16x64xf32, #tpu.memory_space<vmem>>, %arg7: memref<1x64xf32, #tpu.memory_space<vmem>>, %arg8: memref<64x32xf32, #tpu.memory_space<vmem>>, %arg9: memref<1x32xf32, #tpu.memory_space<vmem>>, %arg10: memref<16x16xf32, #tpu.memory_space<vmem>>, %arg11: memref<16x32xf32, #tpu.memory_space<vmem>>) attributes {dimension_semantics = [#tpu.dimension_semantics<parallel>], iteration_bounds = array<i64: 1>, scalar_prefetch = 0 : i64, scratch_operands = 0 : i64, tpu.core_type = #tpu.core_type<tc>, window_params = [{transform_indices = @transform_0, window_bounds = array<i64: 16, 32>}, {pipeline_mode = #tpu.pipeline_mode<synchronous>, transform_indices = @transform_1, window_bounds = array<i64: 32, 64>}, {pipeline_mode = #tpu.pipeline_mode<synchronous>, transform_indices = @transform_2, window_bounds = array<i64: 1, 64>}, {pipeline_mode = #tpu.pipeline_mode<synchronous>, transform_indices = @transform_3, window_bounds = array<i64: 64, 16>}, {pipeline_mode = #tpu.pipeline_mode<synchronous>, transform_indices = @transform_4, window_bounds = array<i64: 1, 16>}, {pipeline_mode = #tpu.pipeline_mode<synchronous>, transform_indices = @transform_5, window_bounds = array<i64: 16, 64>}, {pipeline_mode = #tpu.pipeline_mode<synchronous>, transform_indices = @transform_6, window_bounds = array<i64: 1, 64>}, {pipeline_mode = #tpu.pipeline_mode<synchronous>, transform_indices = @transform_7, window_bounds = array<i64: 64, 32>}, {pipeline_mode = #tpu.pipeline_mode<synchronous>, transform_indices = @transform_8, window_bounds = array<i64: 1, 32>}, {transform_indices = @transform_9, window_bounds = array<i64: 16, 16>}, {transform_indices = @transform_10, window_bounds = array<i64: 16, 32>}]} {
    %c0 = arith.constant 0 : index
    %c0_0 = arith.constant 0 : index
    %0 = vector.load %arg1[%c0, %c0_0] : memref<16x32xf32, #tpu.memory_space<vmem>>, vector<16x32xf32>
    %c0_1 = arith.constant 0 : index
    %c0_2 = arith.constant 0 : index
    %1 = vector.load %arg2[%c0_1, %c0_2] : memref<32x64xf32, #tpu.memory_space<vmem>>, vector<32x64xf32>
    %cst = arith.constant dense<0.000000e+00> : vector<16x64xf32>
    %2 = tpu.matmul %0, %1, %cst {dimension_numbers = #tpu.dot_dimension_numbers<[1], [0], [0], [1], [0, 0, 1, 1], [], []>} : vector<16x32xf32>, vector<32x64xf32>, vector<16x64xf32> -> vector<16x64xf32>
    %c0_3 = arith.constant 0 : index
    %c0_4 = arith.constant 0 : index
    %3 = vector.load %arg3[%c0_3, %c0_4] : memref<1x64xf32, #tpu.memory_space<vmem>>, vector<1x64xf32>
    %4 = vector.broadcast %3 : vector<1x64xf32> to vector<16x64xf32>
    %5 = arith.addf %2, %4 : vector<16x64xf32>
    %cst_5 = arith.constant 0.000000e+00 : f32
    %6 = vector.broadcast %cst_5 : f32 to vector<16x64xf32>
    %7 = arith.maximumf %5, %6 : vector<16x64xf32>
    %c0_6 = arith.constant 0 : index
    %c0_7 = arith.constant 0 : index
    %8 = vector.load %arg4[%c0_6, %c0_7] : memref<64x16xf32, #tpu.memory_space<vmem>>, vector<64x16xf32>
    %cst_8 = arith.constant dense<0.000000e+00> : vector<16x16xf32>
    %9 = tpu.matmul %7, %8, %cst_8 {dimension_numbers = #tpu.dot_dimension_numbers<[1], [0], [0], [1], [0, 0, 1, 1], [], []>} : vector<16x64xf32>, vector<64x16xf32>, vector<16x16xf32> -> vector<16x16xf32>
    %c0_9 = arith.constant 0 : index
    %c0_10 = arith.constant 0 : index
    %10 = vector.load %arg5[%c0_9, %c0_10] : memref<1x16xf32, #tpu.memory_space<vmem>>, vector<1x16xf32>
    %11 = vector.broadcast %10 : vector<1x16xf32> to vector<16x16xf32>
    %12 = arith.addf %9, %11 : vector<16x16xf32>
    %cst_11 = arith.constant 0.000000e+00 : f32
    %13 = vector.broadcast %cst_11 : f32 to vector<16x16xf32>
    %14 = arith.maximumf %12, %13 : vector<16x16xf32>
    %c0_12 = arith.constant 0 : index
    %c0_13 = arith.constant 0 : index
    %15 = vector.load %arg6[%c0_12, %c0_13] : memref<16x64xf32, #tpu.memory_space<vmem>>, vector<16x64xf32>
    %cst_14 = arith.constant dense<0.000000e+00> : vector<16x64xf32>
    %16 = tpu.matmul %14, %15, %cst_14 {dimension_numbers = #tpu.dot_dimension_numbers<[1], [0], [0], [1], [0, 0, 1, 1], [], []>} : vector<16x16xf32>, vector<16x64xf32>, vector<16x64xf32> -> vector<16x64xf32>
    %c0_15 = arith.constant 0 : index
    %c0_16 = arith.constant 0 : index
    %17 = vector.load %arg7[%c0_15, %c0_16] : memref<1x64xf32, #tpu.memory_space<vmem>>, vector<1x64xf32>
    %18 = vector.broadcast %17 : vector<1x64xf32> to vector<16x64xf32>
    %19 = arith.addf %16, %18 : vector<16x64xf32>
    %cst_17 = arith.constant 0.000000e+00 : f32
    %20 = vector.broadcast %cst_17 : f32 to vector<16x64xf32>
    %21 = arith.maximumf %19, %20 : vector<16x64xf32>
    %c0_18 = arith.constant 0 : index
    %c0_19 = arith.constant 0 : index
    %22 = vector.load %arg8[%c0_18, %c0_19] : memref<64x32xf32, #tpu.memory_space<vmem>>, vector<64x32xf32>
    %cst_20 = arith.constant dense<0.000000e+00> : vector<16x32xf32>
    %23 = tpu.matmul %21, %22, %cst_20 {dimension_numbers = #tpu.dot_dimension_numbers<[1], [0], [0], [1], [0, 0, 1, 1], [], []>} : vector<16x64xf32>, vector<64x32xf32>, vector<16x32xf32> -> vector<16x32xf32>
    %c0_21 = arith.constant 0 : index
    %c0_22 = arith.constant 0 : index
    %24 = vector.load %arg9[%c0_21, %c0_22] : memref<1x32xf32, #tpu.memory_space<vmem>>, vector<1x32xf32>
    %25 = vector.broadcast %24 : vector<1x32xf32> to vector<16x32xf32>
    %26 = arith.addf %23, %25 : vector<16x32xf32>
    %27 = arith.negf %26 : vector<16x32xf32>
    %28 = math.exp %27 : vector<16x32xf32>
    %cst_23 = arith.constant 1.000000e+00 : f32
    %29 = vector.broadcast %cst_23 : f32 to vector<16x32xf32>
    %30 = arith.addf %29, %28 : vector<16x32xf32>
    %31 = arith.divf %29, %30 : vector<16x32xf32>
    %c0_24 = arith.constant 0 : index
    %c0_25 = arith.constant 0 : index
    %32 = vector.load %arg10[%c0_24, %c0_25] : memref<16x16xf32, #tpu.memory_space<vmem>>, vector<16x16xf32>
    tpu.vector_store %arg10[%c0_24, %c0_25], %14 {strides = array<i32>} : memref<16x16xf32, #tpu.memory_space<vmem>>, vector<16x16xf32>,
    %c0_26 = arith.constant 0 : index
    %c0_27 = arith.constant 0 : index
    %33 = vector.load %arg11[%c0_26, %c0_27] : memref<16x32xf32, #tpu.memory_space<vmem>>, vector<16x32xf32>
    tpu.vector_store %arg11[%c0_26, %c0_27], %31 {strides = array<i32>} : memref<16x32xf32, #tpu.memory_space<vmem>>, vector<16x32xf32>,
    return
  }
  func.func @transform_0(%arg0: i32) -> (i32, i32) {
    %c0_i32 = arith.constant 0 : i32
    %c0_i32_0 = arith.constant 0 : i32
    return %arg0, %c0_i32 : i32, i32
  }
  func.func @transform_1(%arg0: i32) -> (i32, i32) {
    %c0_i32 = arith.constant 0 : i32
    %c0_i32_0 = arith.constant 0 : i32
    %c0_i32_1 = arith.constant 0 : i32
    return %c0_i32, %c0_i32_0 : i32, i32
  }
  func.func @transform_2(%arg0: i32) -> (i32, i32) {
    %c0_i32 = arith.constant 0 : i32
    %c0_i32_0 = arith.constant 0 : i32
    %c0_i32_1 = arith.constant 0 : i32
    return %c0_i32, %c0_i32_0 : i32, i32
  }
  func.func @transform_3(%arg0: i32) -> (i32, i32) {
    %c0_i32 = arith.constant 0 : i32
    %c0_i32_0 = arith.constant 0 : i32
    %c0_i32_1 = arith.constant 0 : i32
    return %c0_i32, %c0_i32_0 : i32, i32
  }
  func.func @transform_4(%arg0: i32) -> (i32, i32) {
    %c0_i32 = arith.constant 0 : i32
    %c0_i32_0 = arith.constant 0 : i32
    %c0_i32_1 = arith.constant 0 : i32
    return %c0_i32, %c0_i32_0 : i32, i32
  }
  func.func @transform_5(%arg0: i32) -> (i32, i32) {
    %c0_i32 = arith.constant 0 : i32
    %c0_i32_0 = arith.constant 0 : i32
    %c0_i32_1 = arith.constant 0 : i32
    return %c0_i32, %c0_i32_0 : i32, i32
  }
  func.func @transform_6(%arg0: i32) -> (i32, i32) {
    %c0_i32 = arith.constant 0 : i32
    %c0_i32_0 = arith.constant 0 : i32
    %c0_i32_1 = arith.constant 0 : i32
    return %c0_i32, %c0_i32_0 : i32, i32
  }
  func.func @transform_7(%arg0: i32) -> (i32, i32) {
    %c0_i32 = arith.constant 0 : i32
    %c0_i32_0 = arith.constant 0 : i32
    %c0_i32_1 = arith.constant 0 : i32
    return %c0_i32, %c0_i32_0 : i32, i32
  }
  func.func @transform_8(%arg0: i32) -> (i32, i32) {
    %c0_i32 = arith.constant 0 : i32
    %c0_i32_0 = arith.constant 0 : i32
    %c0_i32_1 = arith.constant 0 : i32
    return %c0_i32, %c0_i32_0 : i32, i32
  }
  func.func @transform_9(%arg0: i32) -> (i32, i32) {
    %c0_i32 = arith.constant 0 : i32
    %c0_i32_0 = arith.constant 0 : i32
    return %arg0, %c0_i32 : i32, i32
  }
  func.func @transform_10(%arg0: i32) -> (i32, i32) {
    %c0_i32 = arith.constant 0 : i32
    %c0_i32_0 = arith.constant 0 : i32
    return %arg0, %c0_i32 : i32, i32
  }
}

</mosaic_0001>

<llo_original>
// kernel: tpu_custom_call.1
$region0: #{tpu_custom_call.1}
  #allocation0 [shape = 'u32[]', space=smem, size = 0x4, offset = 0x4, fixed_abs, tag = 'smem constant byte address 0x4 - core index']
  #allocation1 [shape = 'u32[144,128]{1,0:T(1,128)}', space=vmem, size = 0x12000, scoped, tag = 'internal scratch']
  %s0 = inlined_call_operand.vmem [shape: f32[16,32], index: 0, kind: input, shape index: {}]
  %s1 = inlined_call_operand.vmem [shape: f32[32,64], index: 1, kind: input, shape index: {}]
  %s2 = inlined_call_operand.vmem [shape: f32[1,64], index: 2, kind: input, shape index: {}]
  %s3 = inlined_call_operand.vmem [shape: f32[64,16], index: 3, kind: input, shape index: {}]
  %s4 = inlined_call_operand.vmem [shape: f32[1,16], index: 4, kind: input, shape index: {}]
  %s5 = inlined_call_operand.vmem [shape: f32[16,64], index: 5, kind: input, shape index: {}]
  %s6 = inlined_call_operand.vmem [shape: f32[1,64], index: 6, kind: input, shape index: {}]
  %s7 = inlined_call_operand.vmem [shape: f32[64,32], index: 7, kind: input, shape index: {}]
  %s8 = inlined_call_operand.vmem [shape: f32[1,32], index: 8, kind: input, shape index: {}]
  %s9 = inlined_call_operand.hbm [shape: f32[16,16], index: 9, kind: output, shape index: {0}]
  %s10 = inlined_call_operand.hbm [shape: f32[16,32], index: 10, kind: output, shape index: {1}]
  %11 = xla_tuple %s9, %s10
  %s12 = sld [smem:[#allocation0]]
  $region54: #{tpu_custom_call.1} parent=0
    _
  %s14 = ssub.s32 1, %s12
  %s15 = scalar_select 0, %s14, %s12
  $region1: #{tpu_custom_call.1} parent=0
    #allocation2 [shape = 'u8[8192]{0}', space=vmem, size = 0x2000, scoped, tag = 'output window, operand 0, single buffered']
    #allocation3 [shape = 's32[1]{0}', space=sflag, size = 0x4, scoped, tag = 'scoped memory for tpu_custom_call.1']
    #allocation4 [shape = 'u8[8192]{0}', space=vmem, size = 0x2000, scoped, tag = 'output window, operand 1, single buffered']
    #allocation5 [shape = 's32[1]{0}', space=sflag, size = 0x4, scoped, tag = 'scoped memory for tpu_custom_call.1']
    %16 = vsyncpa [#allocation3], 0
    %17 = vsyncpa [#allocation5], 0
    // Predicated region
    $region2: #{tpu_custom_call.1} parent=1 // pred_check
      _
    $region3: #{tpu_custom_call.1} parent=1 // pred_check_branch
      %19 = sbr.rel (0) target = $region5
    $region4: #{tpu_custom_call.1} parent=1 // pred_region
      _
    $region5: #{tpu_custom_call.1} parent=1 // pred_fallthru
      _
    // Predicated region
    $region6: #{tpu_custom_call.1} parent=1 // pred_check
      _
    $region7: #{tpu_custom_call.1} parent=1 // pred_check_branch
      %21 = sbr.rel (0) target = $region9
    $region8: #{tpu_custom_call.1} parent=1 // pred_region
      _
    $region9: #{tpu_custom_call.1} parent=1 // pred_fallthru
      _
    // Predicated region
    $region10: #{tpu_custom_call.1} parent=1 // pred_check
      _
    $region11: #{tpu_custom_call.1} parent=1 // pred_check_branch
      %23 = sbr.rel (0) target = $region13
    $region12: #{tpu_custom_call.1} parent=1 // pred_region
      _
    $region13: #{tpu_custom_call.1} parent=1 // pred_fallthru
      _
    // Predicated region
    $region14: #{tpu_custom_call.1} parent=1 // pred_check
      _
    $region15: #{tpu_custom_call.1} parent=1 // pred_check_branch
      %25 = sbr.rel (0) target = $region17
    $region16: #{tpu_custom_call.1} parent=1 // pred_region
      _
    $region17: #{tpu_custom_call.1} parent=1 // pred_fallthru
      _
    // Predicated region
    $region18: #{tpu_custom_call.1} parent=1 // pred_check
      _
    $region19: #{tpu_custom_call.1} parent=1 // pred_check_branch
      %27 = sbr.rel (0) target = $region21
    $region20: #{tpu_custom_call.1} parent=1 // pred_region
      _
    $region21: #{tpu_custom_call.1} parent=1 // pred_fallthru
      _
    // Predicated region
    $region22: #{tpu_custom_call.1} parent=1 // pred_check
      _
    $region23: #{tpu_custom_call.1} parent=1 // pred_check_branch
      %29 = sbr.rel (0) target = $region25
    $region24: #{tpu_custom_call.1} parent=1 // pred_region
      _
    $region25: #{tpu_custom_call.1} parent=1 // pred_fallthru
      _
    // Predicated region
    $region26: #{tpu_custom_call.1} parent=1 // pred_check
      _
    $region27: #{tpu_custom_call.1} parent=1 // pred_check_branch
      %31 = sbr.rel (0) target = $region29
    $region28: #{tpu_custom_call.1} parent=1 // pred_region
      _
    $region29: #{tpu_custom_call.1} parent=1 // pred_fallthru
      _
    // Predicated region
    $region30: #{tpu_custom_call.1} parent=1 // pred_check
      _
    $region31: #{tpu_custom_call.1} parent=1 // pred_check_branch
      %33 = sbr.rel (0) target = $region33
    $region32: #{tpu_custom_call.1} parent=1 // pred_region
      _
    $region33: #{tpu_custom_call.1} parent=1 // pred_fallthru
      _
    // Predicated region
    $region34: #{tpu_custom_call.1} parent=1 // pred_check
      _
    $region35: #{tpu_custom_call.1} parent=1 // pred_check_branch
      %35 = sbr.rel (0) target = $region37
    $region36: #{tpu_custom_call.1} parent=1 // pred_region
      _
    $region37: #{tpu_custom_call.1} parent=1 // pred_fallthru
      _
    %v36 = vld [vmem:[%s0] sm:$0xff]
    %v37 = vld [vmem:[%s0 + $0x8] sm:$0xff]
    %v38 = vld [vmem:[%s1] sm:$0xff]
    %v39 = vld [vmem:[%s1 + $0x8] sm:$0xff]
    %v40 = vld [vmem:[%s1 + $0x10] sm:$0xff]
    %v41 = vld [vmem:[%s1 + $0x18] sm:$0xff]
    %v42 = vld [vmem:[%s2] sm:$0x1]
    %v44 = vlaneseq
    %v45 = vshrl.u32 %v44, 7
    %v46 = vsub.s32 0, %v45
    %v47 = vrot.slane %v42, %v46
    %vm49 = vcmask 261120
    %v51 = vsel %vm49, %v36, 0
    %v54 = vsel %vm49, %v37, 0
    %56 = vmatprep.subr.mxu0 0.0
    %57 = vmatpush1.msra.mxu0 %v38
    %58 = vmatprep.subr.mxu0 0.0
    %59 = vmatpush1.msra.mxu0 %v39
    %60 = vmatprep.subr.mxu0 0.0
    %61 = vmatpush1.msra.mxu0 %v40
    %62 = vmatprep.subr.mxu0 0.0
    %63 = vmatpush1.msra.mxu0 %v41
    %64 = vmatprep.subr.mxu0 0.0
    %65 = vmatpush1.msra.mxu0 0.0
    %66 = vmatprep.subr.mxu0 0.0
    %67 = vmatpush1.msra.mxu0 0.0
    %68 = vmatprep.subr.mxu0 0.0
    %69 = vmatpush1.msra.mxu0 0.0
    %70 = vmatprep.subr.mxu0 0.0
    %71 = vmatpush1.msra.mxu0 0.0
    %72 = vmatprep.subr.mxu0 0.0
    %73 = vmatpush1.msra.mxu0 0.0
    %74 = vmatprep.subr.mxu0 0.0
    %75 = vmatpush1.msra.mxu0 0.0
    %76 = vmatprep.subr.mxu0 0.0
    %77 = vmatpush1.msra.mxu0 0.0
    %78 = vmatprep.subr.mxu0 0.0
    %79 = vmatpush1.msra.mxu0 0.0
    %80 = vmatprep.subr.mxu0 0.0
    %81 = vmatpush1.msra.mxu0 0.0
    %82 = vmatprep.subr.mxu0 0.0
    %83 = vmatpush1.msra.mxu0 0.0
    %84 = vmatprep.subr.mxu0 0.0
    %85 = vmatpush1.msra.mxu0 0.0
    %86 = vmatprep.subr.mxu0 0.0
    %87 = vmatpush1.msra.mxu0 0.0
    %88 = vmatprep.subr.mxu0 0.0
    %89 = vmatpush1.msra.mxu0 0.0
    %90 = vmatprep.subr.mxu0 0.0
    %91 = vmatpush1.msra.mxu0 0.0
    %92 = vmatprep.subr.mxu0 0.0
    %93 = vmatpush1.msra.mxu0 0.0
    %94 = vmatprep.subr.mxu0 0.0
    %95 = vmatpush1.msra.mxu0 0.0
    %96 = vmatprep.subr.mxu0 0.0
    %97 = vmatpush1.msra.mxu0 0.0
    %98 = vmatprep.subr.mxu0 0.0
    %99 = vmatpush1.msra.mxu0 0.0
    %100 = vmatprep.subr.mxu0 0.0
    %101 = vmatpush1.msra.mxu0 0.0
    %102 = vmatprep.subr.mxu0 0.0
    %103 = vmatpush1.msra.mxu0 0.0
    %104 = vmatprep.subr.mxu0 0.0
    %105 = vmatpush1.msra.mxu0 0.0
    %106 = vmatprep.subr.mxu0 0.0
    %107 = vmatpush1.msra.mxu0 0.0
    %108 = vmatprep.subr.mxu0 0.0
    %109 = vmatpush1.msra.mxu0 0.0
    %110 = vmatprep.subr.mxu0 0.0
    %111 = vmatpush1.msra.mxu0 0.0
    %112 = vmatprep.subr.mxu0 0.0
    %113 = vmatpush1.msra.mxu0 0.0
    %114 = vmatprep.subr.mxu0 0.0
    %115 = vmatpush1.msra.mxu0 0.0
    %116 = vmatprep.subr.mxu0 0.0
    %117 = vmatpush1.msra.mxu0 0.0
    %118 = vmatprep.subr.mxu0 0.0
    %119 = vmatpush1.msra.mxu0 0.0
    %120 = vmatprep.mubr.f32.mxu0 0.0
    %121 = vmatmul.mubr.f32.gmra.mrb[0].mxu0 %v51
    %v122 = vpop.f32.mrb[0].mxu0
    %v123 = vadd.f32 %v47, %v122
    %v124 = vpop.f32.mrb[0].mxu0
    %125 = vmatprep.mubr.f32.mxu0 0.0
    %126 = vmatmul.mubr.f32.gmra.mrb[0].mxu0 %v54
    %v127 = vpop.f32.mrb[0].mxu0
    %v128 = vadd.f32 %v47, %v127
    %v129 = vpop.f32.mrb[0].mxu0
    %130 = vdwg.mxu0
    %v131 = vmax.f32 %v123, 0.0
    %v132 = vmax.f32 %v128, 0.0
    %v133 = vld [vmem:[%s3] sm:$0xff]
    %v134 = vld [vmem:[%s3 + $0x8] sm:$0xff]
    %v135 = vld [vmem:[%s3 + $0x10] sm:$0xff]
    %v136 = vld [vmem:[%s3 + $0x18] sm:$0xff]
    %v137 = vld [vmem:[%s3 + $0x20] sm:$0xff]
    %v138 = vld [vmem:[%s3 + $0x28] sm:$0xff]
    %v139 = vld [vmem:[%s3 + $0x30] sm:$0xff]
    %v140 = vld [vmem:[%s3 + $0x38] sm:$0xff]
    %v141 = vld [vmem:[%s4] sm:$0x1]
    %v143 = vlaneseq
    %v144 = vshrl.u32 %v143, 7
    %v145 = vsub.s32 0, %v144
    %v146 = vrot.slane %v141, %v145
    %vm148 = vcmask 523264
    %v150 = vsel %vm148, %v131, 0
    %v153 = vsel %vm148, %v132, 0
    %155 = vmatprep.subr.mxu0 0.0
    %156 = vmatpush1.msra.mxu0 %v133
    %157 = vmatprep.subr.mxu0 0.0
    %158 = vmatpush1.msra.mxu0 %v134
    %159 = vmatprep.subr.mxu0 0.0
    %160 = vmatpush1.msra.mxu0 %v135
    %161 = vmatprep.subr.mxu0 0.0
    %162 = vmatpush1.msra.mxu0 %v136
    %163 = vmatprep.subr.mxu0 0.0
    %164 = vmatpush1.msra.mxu0 %v137
    %165 = vmatprep.subr.mxu0 0.0
    %166 = vmatpush1.msra.mxu0 %v138
    %167 = vmatprep.subr.mxu0 0.0
    %168 = vmatpush1.msra.mxu0 %v139
    %169 = vmatprep.subr.mxu0 0.0
    %170 = vmatpush1.msra.mxu0 %v140
    %171 = vmatprep.subr.mxu0 0.0
    %172 = vmatpush1.msra.mxu0 0.0
    %173 = vmatprep.subr.mxu0 0.0
    %174 = vmatpush1.msra.mxu0 0.0
    %175 = vmatprep.subr.mxu0 0.0
    %176 = vmatpush1.msra.mxu0 0.0
    %177 = vmatprep.subr.mxu0 0.0
    %178 = vmatpush1.msra.mxu0 0.0
    %179 = vmatprep.subr.mxu0 0.0
    %180 = vmatpush1.msra.mxu0 0.0
    %181 = vmatprep.subr.mxu0 0.0
    %182 = vmatpush1.msra.mxu0 0.0
    %183 = vmatprep.subr.mxu0 0.0
    %184 = vmatpush1.msra.mxu0 0.0
    %185 = vmatprep.subr.mxu0 0.0
    %186 = vmatpush1.msra.mxu0 0.0
    %187 = vmatprep.subr.mxu0 0.0
    %188 = vmatpush1.msra.mxu0 0.0
    %189 = vmatprep.subr.mxu0 0.0
    %190 = vmatpush1.msra.mxu0 0.0
    %191 = vmatprep.subr.mxu0 0.0
    %192 = vmatpush1.msra.mxu0 0.0
    %193 = vmatprep.subr.mxu0 0.0
    %194 = vmatpush1.msra.mxu0 0.0
    %195 = vmatprep.subr.mxu0 0.0
    %196 = vmatpush1.msra.mxu0 0.0
    %197 = vmatprep.subr.mxu0 0.0
    %198 = vmatpush1.msra.mxu0 0.0
    %199 = vmatprep.subr.mxu0 0.0
    %200 = vmatpush1.msra.mxu0 0.0
    %201 = vmatprep.subr.mxu0 0.0
    %202 = vmatpush1.msra.mxu0 0.0
    %203 = vmatprep.subr.mxu0 0.0
    %204 = vmatpush1.msra.mxu0 0.0
    %205 = vmatprep.subr.mxu0 0.0
    %206 = vmatpush1.msra.mxu0 0.0
    %207 = vmatprep.subr.mxu0 0.0
    %208 = vmatpush1.msra.mxu0 0.0
    %209 = vmatprep.subr.mxu0 0.0
    %210 = vmatpush1.msra.mxu0 0.0
    %211 = vmatprep.subr.mxu0 0.0
    %212 = vmatpush1.msra.mxu0 0.0
    %213 = vmatprep.subr.mxu0 0.0
    %214 = vmatpush1.msra.mxu0 0.0
    %215 = vmatprep.subr.mxu0 0.0
    %216 = vmatpush1.msra.mxu0 0.0
    %217 = vmatprep.subr.mxu0 0.0
    %218 = vmatpush1.msra.mxu0 0.0
    %219 = vmatprep.mubr.f32.mxu0 0.0
    %220 = vmatmul.mubr.f32.gmra.mrb[0].mxu0 %v150
    %v221 = vpop.f32.mrb[0].mxu0
    %v222 = vadd.f32 %v146, %v221
    %v223 = vpop.f32.mrb[0].mxu0
    %224 = vmatprep.mubr.f32.mxu0 0.0
    %225 = vmatmul.mubr.f32.gmra.mrb[0].mxu0 %v153
    %v226 = vpop.f32.mrb[0].mxu0
    %v227 = vadd.f32 %v146, %v226
    %v228 = vpop.f32.mrb[0].mxu0
    %229 = vdwg.mxu0
    %v230 = vmax.f32 %v222, 0.0
    %v231 = vmax.f32 %v227, 0.0
    %v232 = vld [vmem:[%s5] sm:$0xff]
    %v233 = vld [vmem:[%s5 + $0x8] sm:$0xff]
    %v234 = vld [vmem:[%s6] sm:$0x1]
    %v236 = vlaneseq
    %v237 = vshrl.u32 %v236, 7
    %v238 = vsub.s32 0, %v237
    %v239 = vrot.slane %v234, %v238
    %vm241 = vcmask 130048
    %v243 = vsel %vm241, %v230, 0
    %v246 = vsel %vm241, %v231, 0
    %248 = vmatprep.subr.mxu0 0.0
    %249 = vmatpush1.msra.mxu0 %v232
    %250 = vmatprep.subr.mxu0 0.0
    %251 = vmatpush1.msra.mxu0 %v233
    %252 = vmatprep.subr.mxu0 0.0
    %253 = vmatpush1.msra.mxu0 0.0
    %254 = vmatprep.subr.mxu0 0.0
    %255 = vmatpush1.msra.mxu0 0.0
    %256 = vmatprep.subr.mxu0 0.0
    %257 = vmatpush1.msra.mxu0 0.0
    %258 = vmatprep.subr.mxu0 0.0
    %259 = vmatpush1.msra.mxu0 0.0
    %260 = vmatprep.subr.mxu0 0.0
    %261 = vmatpush1.msra.mxu0 0.0
    %262 = vmatprep.subr.mxu0 0.0
    %263 = vmatpush1.msra.mxu0 0.0
    %264 = vmatprep.subr.mxu0 0.0
    %265 = vmatpush1.msra.mxu0 0.0
    %266 = vmatprep.subr.mxu0 0.0
    %267 = vmatpush1.msra.mxu0 0.0
    %268 = vmatprep.subr.mxu0 0.0
    %269 = vmatpush1.msra.mxu0 0.0
    %270 = vmatprep.subr.mxu0 0.0
    %271 = vmatpush1.msra.mxu0 0.0
    %272 = vmatprep.subr.mxu0 0.0
    %273 = vmatpush1.msra.mxu0 0.0
    %274 = vmatprep.subr.mxu0 0.0
    %275 = vmatpush1.msra.mxu0 0.0
    %276 = vmatprep.subr.mxu0 0.0
    %277 = vmatpush1.msra.mxu0 0.0
    %278 = vmatprep.subr.mxu0 0.0
    %279 = vmatpush1.msra.mxu0 0.0
    %280 = vmatprep.subr.mxu0 0.0
    %281 = vmatpush1.msra.mxu0 0.0
    %282 = vmatprep.subr.mxu0 0.0
    %283 = vmatpush1.msra.mxu0 0.0
    %284 = vmatprep.subr.mxu0 0.0
    %285 = vmatpush1.msra.mxu0 0.0
    %286 = vmatprep.subr.mxu0 0.0
    %287 = vmatpush1.msra.mxu0 0.0
    %288 = vmatprep.subr.mxu0 0.0
    %289 = vmatpush1.msra.mxu0 0.0
    %290 = vmatprep.subr.mxu0 0.0
    %291 = vmatpush1.msra.mxu0 0.0
    %292 = vmatprep.subr.mxu0 0.0
    %293 = vmatpush1.msra.mxu0 0.0
    %294 = vmatprep.subr.mxu0 0.0
    %295 = vmatpush1.msra.mxu0 0.0
    %296 = vmatprep.subr.mxu0 0.0
    %297 = vmatpush1.msra.mxu0 0.0
    %298 = vmatprep.subr.mxu0 0.0
    %299 = vmatpush1.msra.mxu0 0.0
    %300 = vmatprep.subr.mxu0 0.0
    %301 = vmatpush1.msra.mxu0 0.0
    %302 = vmatprep.subr.mxu0 0.0
    %303 = vmatpush1.msra.mxu0 0.0
    %304 = vmatprep.subr.mxu0 0.0
    %305 = vmatpush1.msra.mxu0 0.0
    %306 = vmatprep.subr.mxu0 0.0
    %307 = vmatpush1.msra.mxu0 0.0
    %308 = vmatprep.subr.mxu0 0.0
    %309 = vmatpush1.msra.mxu0 0.0
    %310 = vmatprep.subr.mxu0 0.0
    %311 = vmatpush1.msra.mxu0 0.0
    %312 = vmatprep.mubr.f32.mxu0 0.0
    %313 = vmatmul.mubr.f32.gmra.mrb[0].mxu0 %v243
    %v314 = vpop.f32.mrb[0].mxu0
    %v315 = vadd.f32 %v239, %v314
    %v316 = vpop.f32.mrb[0].mxu0
    %317 = vmatprep.mubr.f32.mxu0 0.0
    %318 = vmatmul.mubr.f32.gmra.mrb[0].mxu0 %v246
    %v319 = vpop.f32.mrb[0].mxu0
    %v320 = vadd.f32 %v239, %v319
    %v321 = vpop.f32.mrb[0].mxu0
    %322 = vdwg.mxu0
    %v323 = vmax.f32 %v315, 0.0
    %v324 = vmax.f32 %v320, 0.0
    %v325 = vld [vmem:[%s7] sm:$0xff]
    %v326 = vld [vmem:[%s7 + $0x8] sm:$0xff]
    %v327 = vld [vmem:[%s7 + $0x10] sm:$0xff]
    %v328 = vld [vmem:[%s7 + $0x18] sm:$0xff]
    %v329 = vld [vmem:[%s7 + $0x20] sm:$0xff]
    %v330 = vld [vmem:[%s7 + $0x28] sm:$0xff]
    %v331 = vld [vmem:[%s7 + $0x30] sm:$0xff]
    %v332 = vld [vmem:[%s7 + $0x38] sm:$0xff]
    %v333 = vld [vmem:[%s8] sm:$0x1]
    %v335 = vlaneseq
    %v336 = vshrl.u32 %v335, 7
    %v337 = vsub.s32 0, %v336
    %v338 = vrot.slane %v333, %v337
    %v341 = vsel %vm148, %v323, 0
    %v344 = vsel %vm148, %v324, 0
    %346 = vmatprep.subr.mxu0 0.0
    %347 = vmatpush1.msra.mxu0 %v325
    %348 = vmatprep.subr.mxu0 0.0
    %349 = vmatpush1.msra.mxu0 %v326
    %350 = vmatprep.subr.mxu0 0.0
    %351 = vmatpush1.msra.mxu0 %v327
    %352 = vmatprep.subr.mxu0 0.0
    %353 = vmatpush1.msra.mxu0 %v328
    %354 = vmatprep.subr.mxu0 0.0
    %355 = vmatpush1.msra.mxu0 %v329
    %356 = vmatprep.subr.mxu0 0.0
    %357 = vmatpush1.msra.mxu0 %v330
    %358 = vmatprep.subr.mxu0 0.0
    %359 = vmatpush1.msra.mxu0 %v331
    %360 = vmatprep.subr.mxu0 0.0
    %361 = vmatpush1.msra.mxu0 %v332
    %362 = vmatprep.subr.mxu0 0.0
    %363 = vmatpush1.msra.mxu0 0.0
    %364 = vmatprep.subr.mxu0 0.0
    %365 = vmatpush1.msra.mxu0 0.0
    %366 = vmatprep.subr.mxu0 0.0
    %367 = vmatpush1.msra.mxu0 0.0
    %368 = vmatprep.subr.mxu0 0.0
    %369 = vmatpush1.msra.mxu0 0.0
    %370 = vmatprep.subr.mxu0 0.0
    %371 = vmatpush1.msra.mxu0 0.0
    %372 = vmatprep.subr.mxu0 0.0
    %373 = vmatpush1.msra.mxu0 0.0
    %374 = vmatprep.subr.mxu0 0.0
    %375 = vmatpush1.msra.mxu0 0.0
    %376 = vmatprep.subr.mxu0 0.0
    %377 = vmatpush1.msra.mxu0 0.0
    %378 = vmatprep.subr.mxu0 0.0
    %379 = vmatpush1.msra.mxu0 0.0
    %380 = vmatprep.subr.mxu0 0.0
    %381 = vmatpush1.msra.mxu0 0.0
    %382 = vmatprep.subr.mxu0 0.0
    %383 = vmatpush1.msra.mxu0 0.0
    %384 = vmatprep.subr.mxu0 0.0
    %385 = vmatpush1.msra.mxu0 0.0
    %386 = vmatprep.subr.mxu0 0.0
    %387 = vmatpush1.msra.mxu0 0.0
    %388 = vmatprep.subr.mxu0 0.0
    %389 = vmatpush1.msra.mxu0 0.0
    %390 = vmatprep.subr.mxu0 0.0
    %391 = vmatpush1.msra.mxu0 0.0
    %392 = vmatprep.subr.mxu0 0.0
    %393 = vmatpush1.msra.mxu0 0.0
    %394 = vmatprep.subr.mxu0 0.0
    %395 = vmatpush1.msra.mxu0 0.0
    %396 = vmatprep.subr.mxu0 0.0
    %397 = vmatpush1.msra.mxu0 0.0
    %398 = vmatprep.subr.mxu0 0.0
    %399 = vmatpush1.msra.mxu0 0.0
    %400 = vmatprep.subr.mxu0 0.0
    %401 = vmatpush1.msra.mxu0 0.0
    %402 = vmatprep.subr.mxu0 0.0
    %403 = vmatpush1.msra.mxu0 0.0
    %404 = vmatprep.subr.mxu0 0.0
    %405 = vmatpush1.msra.mxu0 0.0
    %406 = vmatprep.subr.mxu0 0.0
    %407 = vmatpush1.msra.mxu0 0.0
    %408 = vmatprep.subr.mxu0 0.0
    %409 = vmatpush1.msra.mxu0 0.0
    %410 = vmatprep.mubr.f32.mxu0 0.0
    %411 = vmatmul.mubr.f32.gmra.mrb[0].mxu0 %v341
    %v412 = vpop.f32.mrb[0].mxu0
    %v413 = vadd.f32 %v338, %v412
    %v414 = vpop.f32.mrb[0].mxu0
    %415 = vmatprep.mubr.f32.mxu0 0.0
    %416 = vmatmul.mubr.f32.gmra.mrb[0].mxu0 %v344
    %v417 = vpop.f32.mrb[0].mxu0
    %v418 = vadd.f32 %v338, %v417
    %v419 = vpop.f32.mrb[0].mxu0
    %420 = vdwg.mxu0
    %v421 = vxor.u32 %v413, 2147483648
    %v422 = vxor.u32 %v418, 2147483648
    %v423 = vmul.f32 %v421, 1.442695
    %v424 = vpow.pop %v423
    %v425 = vmul.f32 %v422, 1.442695
    %v426 = vpow.pop %v425
    %v427 = vadd.f32 %v424, 1.0
    %v428 = vadd.f32 %v426, 1.0
    %v429 = vrcp.pop %v427
    %v430 = vmul.f32 1.0, %v429
    %v431 = vrcp.pop %v428
    %v432 = vmul.f32 1.0, %v431
    %433 = vst.msk [vmem:[#allocation2] sm:$0xff] %vm241, %v230
    %434 = vst.msk [vmem:[#allocation2 + $0x8] sm:$0xff] %vm241, %v231
    %435 = vst.msk [vmem:[#allocation4] sm:$0xff] %vm49, %v430
    %436 = vst.msk [vmem:[#allocation4 + $0x8] sm:$0xff] %vm49, %v432
    // Predicated region
    $region38: #{tpu_custom_call.1} parent=1 // pred_check
      _
    $region39: #{tpu_custom_call.1} parent=1 // pred_check_branch
      %438 = sbr.rel (0) target = $region41
    $region40: #{tpu_custom_call.1} parent=1 // pred_region
      %s440 = ssub.s32 256, 256
      %441 = vsyncadd [#allocation3], %s440
      %s442 = sshll.u32 [#allocation2], 4
      %s443 = int_to_ptr.vmem [resolvable:$true] %s442
      %448 = dma.vmem_to_hbm [thread:$0]  %s443, 256, %s9, [#allocation3], 128, 128, 8
    $region41: #{tpu_custom_call.1} parent=1 // pred_fallthru
      _
    // Predicated region
    $region42: #{tpu_custom_call.1} parent=1 // pred_check
      _
    $region43: #{tpu_custom_call.1} parent=1 // pred_check_branch
      %450 = sbr.rel (0) target = $region45
    $region44: #{tpu_custom_call.1} parent=1 // pred_region
      %s452 = ssub.s32 256, 256
      %453 = vsyncadd [#allocation5], %s452
      %s454 = sshll.u32 [#allocation4], 4
      %s455 = int_to_ptr.vmem [resolvable:$true] %s454
      %460 = dma.vmem_to_hbm [thread:$0]  %s455, 256, %s10, [#allocation5], 128, 128, 8
    $region45: #{tpu_custom_call.1} parent=1 // pred_fallthru
      _
    // Predicated region
    $region46: #{tpu_custom_call.1} parent=1 // pred_check
      _
    $region47: #{tpu_custom_call.1} parent=1 // pred_check_branch
      %462 = sbr.rel (0) target = $region49
    $region48: #{tpu_custom_call.1} parent=1 // pred_region
      %463 = dma.done [#allocation3], 256
    $region49: #{tpu_custom_call.1} parent=1 // pred_fallthru
      _
    // Predicated region
    $region50: #{tpu_custom_call.1} parent=1 // pred_check
      _
    $region51: #{tpu_custom_call.1} parent=1 // pred_check_branch
      %465 = sbr.rel (0) target = $region53
    $region52: #{tpu_custom_call.1} parent=1 // pred_region
      %466 = dma.done [#allocation5], 256
    $region53: #{tpu_custom_call.1} parent=1 // pred_fallthru
      _
    %467 = vsyncpa [#allocation3], 1
    %468 = vsyncpa [#allocation5], 1

</llo_original>
